<compile_context>
chip_gen: v7x
topology: tpu7x:2x2x1
jax: 0.10.0
libtpu: 0.0.40
codegen_flags: <defaults>
</compile_context>

<pallas_src>
import jax
import jax.numpy as jnp
from jax.experimental import pallas as pl
from jax.experimental.pallas import tpu as pltpu


def _add_pe_kernel(x_ref, pe_ref, o_ref):
    # x_ref/o_ref: (b_tile, ...); pe_ref has a leading 1 that broadcasts over
    # the batch tile. Pure memory-bound broadcast add - no transcendentals.
    o_ref[...] = x_ref[...] + pe_ref[...]


def _sinusoidal_table(T, D, dtype):
    """(T, D) table, identical math to the PyTorch module's self.P buffer."""
    pos = jnp.arange(T, dtype=jnp.float32)[:, None]                         # (T, 1)
    freqs = jnp.power(10000.0, jnp.arange(0, D, 2, dtype=jnp.float32) / D)  # (D//2,)
    ang = pos / freqs                                                       # (T, D//2)
    P = jnp.zeros((T, D), jnp.float32)
    P = P.at[:, 0::2].set(jnp.sin(ang))
    P = P.at[:, 1::2].set(jnp.cos(ang))
    # NOTE: PE is rounded to x.dtype *before* the add. For bf16 inputs PyTorch
    # promotes X + P to f32 (rounding post-add); the difference is benign.
    return P.astype(dtype)


def _largest_divisor(n, limit, multiple=1):
    """Largest divisor of `n` that is <= `limit` and a multiple of `multiple`."""
    best = None
    i = 1
    while i * i <= n:
        if n % i == 0:
            for d in (i, n // i):
                if d <= limit and d % multiple == 0 and (best is None or d > best):
                    best = d
        i += 1
    return best


def _pick_divisor(n, limit, multiples):
    """Try each alignment in `multiples` in order; return the first hit."""
    for m in multiples:
        d = _largest_divisor(n, limit, m)
        if d is not None:
            return d
    return None


def positional_encoding(x, *, dropout_p=0.0, target_block_bytes=2 * 1024 * 1024):
    """x: (B, T, D). Returns dropout(x + P[:, :T, :]) with dropout_p == 0."""
    if dropout_p != 0.0:
        # TODO(synk): non-zero dropout would need pltpu.prng_seed / prng_random_bits masking.
        raise NotImplementedError("only dropout_p == 0 (as in the reference usage) is supported")

    B, T, D = x.shape
    assert D % 2 == 0, "num_hiddens must be even (as in the PyTorch module)"

    itemsize = jnp.dtype(x.dtype).itemsize
    # Dtype-aware sublane packing: 8 rows (f32), 16 (bf16), 32 (int8/fp8).
    sublane_mult = max(8, 32 // itemsize)

    # Per-operand block budget.  Cap to half the array once the array is
    # non-trivial so the grid has >= 2 blocks (keeps both v7x TCs busy).
    total_bytes = B * T * D * itemsize
    eff_block_bytes = target_block_bytes
    if total_bytes >= 1024 * 1024:
        eff_block_bytes = min(eff_block_bytes, total_bytes // 2)
    limit_elems = max(128, eff_block_bytes // itemsize)

    pe = _sinusoidal_table(T, D, x.dtype)

    compiler_params = pltpu.CompilerParams(
        dimension_semantics=("parallel", "parallel"),
        vmem_limit_bytes=32 * 1024 * 1024,
    )

    # ---- Path A: native (B, T, D) layout (lane-dense, PE has no padding) ----
    # Requires D a multiple of 128; if T has no legal (multiple-of-8) tile we
    # only take this path when the full (T, D) slab already fits the budget.
    use_3d = (D % 128 == 0) and (T % 8 == 0 or T * D <= limit_elems)

    if use_3d:
        t_budget = max(8, limit_elems // D)
        t_tile = _pick_divisor(T, min(T, t_budget), (sublane_mult, 8)) or T
        b_budget = max(1, limit_elems // (t_tile * D))
        # Leading dim: no alignment constraint, any divisor is legal; a
        # divisor <= b_budget always exists (1), so the budget is never blown.
        b_tile = _largest_divisor(B, min(B, b_budget), 1)

        pe3 = pe.reshape(1, T, D)
        grid = (T // t_tile, B // b_tile)

        out = pl.pallas_call(
            _add_pe_kernel,
            out_shape=jax.ShapeDtypeStruct((B, T, D), x.dtype),
            grid_spec=pltpu.PrefetchScalarGridSpec(
                num_scalar_prefetch=0,
                grid=grid,
                in_specs=[
                    pl.BlockSpec((b_tile, t_tile, D), lambda t, b: (b, t, 0)),
                    pl.BlockSpec((1, t_tile, D), lambda t, b: (0, t, 0)),
                ],
                out_specs=pl.BlockSpec((b_tile, t_tile, D), lambda t, b: (b, t, 0)),
            ),
            compiler_params=compiler_params,
            input_output_aliases={0: 0},
        )(x, pe3)
        return out

    # ---- Path B: flattened (B, T*D) layout (small / odd D) ----
    F = T * D
    x2 = x.reshape(B, F)
    pe2 = pe.reshape(1, F)

    # The (1, f_tile) PE block is stored as 8 sublanes in VMEM -> budget it at
    # 8x; this also guarantees at least 8 batch rows of x fit in the budget.
    f_budget = max(128, limit_elems // 8)
    f_tile = None
    if F % 128 == 0:
        f_tile = _largest_divisor(F, min(F, f_budget), 128)
    if f_tile is None:
        # Odd sizes: any divisor keeps VMEM bounded (stores may be masked).
        f_tile = _largest_divisor(F, min(F, f_budget), 1) or F

    rows_budget = max(1, limit_elems // f_tile)
    if B < 8:
        b_tile = B  # full (small) batch axis is always a legal sublane dim
    else:
        b_tile = _pick_divisor(B, rows_budget, (sublane_mult, 8))
        if b_tile is None:
            # B has no multiple-of-8 divisor (legality requires the sublane dim
            # to be a multiple of 8 or the full axis) -> must take the full
            # batch; shrink f_tile so the block still respects the budget.
            b_tile = B
            mult = 128 if F % 128 == 0 else 1
            f_tile = _largest_divisor(F, max(mult, limit_elems // B), mult) or f_tile

    grid = (F // f_tile, B // b_tile)

    out2 = pl.pallas_call(
        _add_pe_kernel,
        out_shape=jax.ShapeDtypeStruct((B, F), x.dtype),
        grid_spec=pltpu.PrefetchScalarGridSpec(
            num_scalar_prefetch=0,
            grid=grid,
            in_specs=[
                pl.BlockSpec((b_tile, f_tile), lambda f, b: (b, f)),
                pl.BlockSpec((1, f_tile), lambda f, b: (0, f)),
            ],
            out_specs=pl.BlockSpec((b_tile, f_tile), lambda f, b: (b, f)),
        ),
        compiler_params=compiler_params,
        input_output_aliases={0: 0},
    )(x2, pe2)
    return out2.reshape(B, T, D)


def _reference(x):
    B, T, D = x.shape
    return x + _sinusoidal_table(T, D, x.dtype)[None, :, :]


if __name__ == "__main__":
    key = jax.random.PRNGKey(0)

    # Test 1: shapes implied by the module usage (batch=2, num_steps=8,
    # encoding_dim=32) -> flattened path, single block.
    B, T, D = 2, 8, 32
    x = jax.random.normal(key, (B, T, D), dtype=jnp.float32)
    out = jax.block_until_ready(positional_encoding(x))
    assert out.shape == (B, T, D) and out.dtype == jnp.float32
    assert jnp.allclose(out, _reference(x), atol=1e-5, rtol=1e-5)

    # Test 2: D multiple of 128 -> native 3D path; tiny block budget forces a
    # multi-block grid with the time axis tiled and batch as the inner axis.
    x2 = jax.random.normal(jax.random.PRNGKey(1), (8, 128, 128), dtype=jnp.float32)
    out2 = jax.block_until_ready(positional_encoding(x2, target_block_bytes=32 * 1024))
    assert jnp.allclose(out2, _reference(x2), atol=1e-5, rtol=1e-5)

    # Test 3: odd / non-128-divisible sizes -> flattened fallback with
    # full-extent (legal) blocks.
    x3 = jax.random.normal(jax.random.PRNGKey(2), (3, 7, 10), dtype=jnp.float32)
    out3 = jax.block_until_ready(positional_encoding(x3))
    assert jnp.allclose(out3, _reference(x3), atol=1e-5, rtol=1e-5)

    # Test 4: >= 1 MiB array at default budget -> tile budget is capped so the
    # grid has >= 2 parallel blocks (v7x dual-TensorCore split).
    x4 = jax.random.normal(jax.random.PRNGKey(3), (4, 512, 256), dtype=jnp.float32)
    out4 = jax.block_until_ready(positional_encoding(x4))
    assert jnp.allclose(out4, _reference(x4), atol=1e-5, rtol=1e-5)

    print("KERNEL_OK")
</pallas_src>

<mosaic_0001>
module attributes {stable_mosaic.version = 11 : i64} {
  func.func @_add_pe_kernel(%arg0: i32, %arg1: i32, %arg2: memref<2x256xf32, #tpu.memory_space<vmem>>, %arg3: memref<1x256xf32, #tpu.memory_space<vmem>>, %arg4: memref<2x256xf32, #tpu.memory_space<vmem>>) attributes {dimension_semantics = [#tpu.dimension_semantics<parallel>, #tpu.dimension_semantics<parallel>], iteration_bounds = array<i64: 1, 1>, scalar_prefetch = 0 : i64, scratch_operands = 0 : i64, tpu.core_type = #tpu.core_type<tc>, window_params = [{transform_indices = @transform_0, window_bounds = array<i64: 2, 256>}, {transform_indices = @transform_1, window_bounds = array<i64: 1, 256>}, {transform_indices = @transform_2, window_bounds = array<i64: 2, 256>}]} {
    %c0 = arith.constant 0 : index
    %c0_0 = arith.constant 0 : index
    %0 = vector.load %arg2[%c0, %c0_0] : memref<2x256xf32, #tpu.memory_space<vmem>>, vector<2x256xf32>
    %c0_1 = arith.constant 0 : index
    %c0_2 = arith.constant 0 : index
    %1 = vector.load %arg3[%c0_1, %c0_2] : memref<1x256xf32, #tpu.memory_space<vmem>>, vector<1x256xf32>
    %2 = vector.broadcast %1 : vector<1x256xf32> to vector<2x256xf32>
    %3 = arith.addf %0, %2 : vector<2x256xf32>
    %c0_3 = arith.constant 0 : index
    %c0_4 = arith.constant 0 : index
    %4 = vector.load %arg4[%c0_3, %c0_4] : memref<2x256xf32, #tpu.memory_space<vmem>>, vector<2x256xf32>
    tpu.vector_store %arg4[%c0_3, %c0_4], %3 {strides = array<i32>} : memref<2x256xf32, #tpu.memory_space<vmem>>, vector<2x256xf32>,
    return
  }
  func.func @transform_0(%arg0: i32, %arg1: i32) -> (i32, i32) {
    %c0_i32 = arith.constant 0 : i32
    return %arg1, %arg0 : i32, i32
  }
  func.func @transform_1(%arg0: i32, %arg1: i32) -> (i32, i32) {
    %c0_i32 = arith.constant 0 : i32
    %c0_i32_0 = arith.constant 0 : i32
    return %c0_i32, %arg0 : i32, i32
  }
  func.func @transform_2(%arg0: i32, %arg1: i32) -> (i32, i32) {
    %c0_i32 = arith.constant 0 : i32
    return %arg1, %arg0 : i32, i32
  }
}

</mosaic_0001>

<llo_original>
// kernel: tpu_custom_call.1
$region0: #{tpu_custom_call.1}
  #allocation0 [shape = 'u32[]', space=smem, size = 0x4, offset = 0x4, fixed_abs, tag = 'smem constant byte address 0x4 - core index']
  #allocation1 [shape = 'u32[144,128]{1,0:T(1,128)}', space=vmem, size = 0x12000, scoped, tag = 'internal scratch']
  %s0 = inlined_call_operand.hbm [shape: f32[2,256], index: 0, kind: input, shape index: {}, may-alias: {0,2}]
  %s1 = inlined_call_operand.vmem [shape: f32[1,256], index: 1, kind: input, shape index: {}]
  %s2 = inlined_call_operand.hbm [shape: f32[2,256], index: 2, kind: output, shape index: {}, may-alias: {0,2}]
  %s3 = sld [smem:[#allocation0]]
  $region22: #{tpu_custom_call.1} parent=0
    _
  %s5 = ssub.s32 1, %s3
  %s6 = scalar_select 0, %s5, %s3
  $region1: #{tpu_custom_call.1} parent=0
    #allocation2 [shape = 'u8[2048]{0}', space=vmem, size = 0x800, scoped, tag = 'input window, operand 0, single buffered']
    #allocation3 [shape = 's32[1]{0}', space=sflag, size = 0x4, scoped, tag = 'scoped memory for tpu_custom_call.1']
    #allocation4 [shape = 's32[1]{0}', space=sflag, size = 0x4, scoped, tag = 'scoped memory for tpu_custom_call.1']
    #allocation5 [shape = 'u8[2048]{0}', space=vmem, size = 0x800, scoped, tag = 'output window, operand 0, single buffered']
    %7 = vsyncpa [#allocation3], 0
    %8 = vsyncpa [#allocation4], 0
    // Predicated region
    $region2: #{tpu_custom_call.1} parent=1 // pred_check
      _
    $region3: #{tpu_custom_call.1} parent=1 // pred_check_branch
      %10 = sbr.rel (0) target = $region5
    $region4: #{tpu_custom_call.1} parent=1 // pred_region
      %s12 = ssub.s32 64, 64
      %13 = vsyncadd [#allocation3], %s12
      %s15 = sshll.u32 [#allocation2], 4
      %s16 = int_to_ptr.vmem [resolvable:$true] %s15
      %18 = dma.hbm_to_vmem [thread:$0]  %s0, 64, %s16, [#allocation3]
    $region5: #{tpu_custom_call.1} parent=1 // pred_fallthru
      _
    // Predicated region
    $region6: #{tpu_custom_call.1} parent=1 // pred_check
      _
    $region7: #{tpu_custom_call.1} parent=1 // pred_check_branch
      %20 = sbr.rel (0) target = $region9
    $region8: #{tpu_custom_call.1} parent=1 // pred_region
      _
    $region9: #{tpu_custom_call.1} parent=1 // pred_fallthru
      _
    // Predicated region
    $region10: #{tpu_custom_call.1} parent=1 // pred_check
      _
    $region11: #{tpu_custom_call.1} parent=1 // pred_check_branch
      %22 = sbr.rel (0) target = $region13
    $region12: #{tpu_custom_call.1} parent=1 // pred_region
      %23 = dma.done [#allocation3], 64
    $region13: #{tpu_custom_call.1} parent=1 // pred_fallthru
      _
    %v24 = vld [vmem:[#allocation2] sm:$0xf]
    %v25 = vld [vmem:[%s1] sm:$0x3]
    %v27 = vlaneseq
    %v28 = vshrl.u32 %v27, 7
    %v29 = vsub.s32 0, %v28
    %v30 = vrot.slane %v25, %v29
    %v31 = vlaneseq
    %v32 = vshrl.u32 %v31, 7
    %v33 = vsub.s32 1, %v32
    %v34 = vrot.slane %v25, %v33
    %v35 = vcombine.low %v30, %v34
    %v37 = vunpack.c.l.s4 1983009808
    %v38 = vunpack.c.0.s8 %v37
    %v39 = vlaneseq
    %v40 = vshrl.u32 %v39, 7
    %v41 = vsub.s32 %v38, %v40
    %v42 = vrot.slane %v35, %v41
    %v44 = vadd.f32 %v24, %v42
    %45 = vst [vmem:[#allocation5] sm:$0xf] %v44
    // Predicated region
    $region14: #{tpu_custom_call.1} parent=1 // pred_check
      _
    $region15: #{tpu_custom_call.1} parent=1 // pred_check_branch
      %47 = sbr.rel (0) target = $region17
    $region16: #{tpu_custom_call.1} parent=1 // pred_region
      %s49 = ssub.s32 64, 64
      %50 = vsyncadd [#allocation4], %s49
      %s52 = sshll.u32 [#allocation5], 4
      %s53 = int_to_ptr.vmem [resolvable:$true] %s52
      %55 = dma.vmem_to_hbm [thread:$0]  %s53, 64, %s2, [#allocation4]
    $region17: #{tpu_custom_call.1} parent=1 // pred_fallthru
      _
    // Predicated region
    $region18: #{tpu_custom_call.1} parent=1 // pred_check
      _
    $region19: #{tpu_custom_call.1} parent=1 // pred_check_branch
      %57 = sbr.rel (0) target = $region21
    $region20: #{tpu_custom_call.1} parent=1 // pred_region
      %58 = dma.done [#allocation4], 64
    $region21: #{tpu_custom_call.1} parent=1 // pred_fallthru
      _
    %59 = vsyncpa [#allocation3], 1
    %60 = vsyncpa [#allocation4], 1

</llo_original>
